<compile_context>
chip_gen: v7x
topology: tpu7x:2x2x1
jax: 0.10.0
libtpu: 0.0.40
codegen_flags: <defaults>
</compile_context>

<pallas_src>
import functools

import jax
import jax.numpy as jnp
from jax.experimental import pallas as pl
from jax.experimental.pallas import tpu as pltpu


def _round_up(x, m):
    return ((x + m - 1) // m) * m


@functools.lru_cache(maxsize=1)
def _vmem_budget_bytes():
    """Per-generation scoped-VMEM budget (review: re-derive per chip).

    v7x: 64 MiB/core -> ~48 MiB budget; v5e/v6e: 128 MiB -> ~96 MiB budget.
    """
    cap = 64 << 20                       # conservative (v7x-sized) fallback
    try:
        cap = int(pltpu.get_tpu_info().vmem_capacity_bytes)
    except Exception:                    # interpret / non-TPU fallback
        pass
    return int(max(32 << 20, min(0.75 * cap, cap - (16 << 20))))


def _choose_tile_rows(m_g, halo, k_in, cout_g, budget):
    """Largest flattened-row tile (multiple of `halo`) fitting the VMEM budget."""
    k_lane = _round_up(k_in, 128)
    c_lane = _round_up(cout_g, 128)
    # per tile-row: 2 double-buffered bf16 input planes + bf16 out + f32 scratch acc
    per_row = 8 * k_lane + 8 * c_lane
    fixed = (2 * halo * k_lane * 2                       # halo double-buffer
             + 2 * 3 * _round_up(k_in, 8) * c_lane * 2   # weight double-buffer
             + (2 << 20))                                # misc slack
    t_max = max((budget - fixed) // per_row, halo)
    full = _round_up(m_g, halo)
    if full <= t_max:
        return full                                      # whole image in one tile
    return max(halo, (t_max // halo) * halo)


def _make_stage_kernel(tile_rows, shift):
    """Fused 3x3/s2 conv (3 dots of K=3*cin*g + halo dot) + bias + ReLU, one M-tile."""
    top = tile_rows - shift

    def kernel(p0_ref, h0_ref, p1_ref, w_ref, b_ref, o_ref, acc_ref):
        # dy=0 (even input rows) and dy=1 (odd input rows) taps are row-aligned with
        # the outputs; dy=2 is the even-row plane shifted by one output row (`shift`
        # flattened rows), split across the main block and the small halo block.
        acc_ref[...] = (
            jnp.dot(p0_ref[0], w_ref[0], preferred_element_type=jnp.float32)
            + jnp.dot(p1_ref[0], w_ref[1], preferred_element_type=jnp.float32))
        acc_ref[:top, :] = acc_ref[:top, :] + jnp.dot(
            p0_ref[0, shift:, :], w_ref[2], preferred_element_type=jnp.float32)
        acc_ref[top:, :] = acc_ref[top:, :] + jnp.dot(
            h0_ref[0, :shift, :], w_ref[2], preferred_element_type=jnp.float32)
        o_ref[0] = jnp.maximum(acc_ref[...] + b_ref[...], 0.0).astype(o_ref.dtype)

    return kernel


def conv3x3_s2_bn_relu(x_nhwc, weight, scale, bias, *, force_tile_rows=None):
    """3x3 stride-2 pad-1 conv + folded-BN affine + ReLU as one Pallas kernel.

    x_nhwc : (N, H, W, Cin)     weight : (3, 3, Cin, Cout)
    scale, bias : (1, Cout)     returns (N, ceil(H/2), ceil(W/2), Cout) bf16 NHWC
    """
    n, h, w, cin = x_nhwc.shape
    cout = weight.shape[-1]
    h_out, w_out = (h + 1) // 2, (w + 1) // 2             # matches k3/s2/p1
    m = h_out * w_out

    # ---- lane grouping for narrow cout (lane-dense stores, denser cin=3 LHS) ----
    # g consecutive output pixels share one 128-lane group: the LHS becomes
    # (m/g, g*3*cin) via a FREE reshape and the weights a block-diagonal
    # (g*3*cin, g*cout) matrix.  Needs w_out % g == 0 so the dy=2 row shift stays a
    # whole number of grouped rows.
    g = 1
    if cout < 128 and 128 % cout == 0 and w_out % (128 // cout) == 0:
        g = 128 // cout
    k_in = 3 * cin * g
    cout_g = cout * g
    m_g = m // g
    wout_g = w_out // g

    # ---- pad once, build the two dx-packed row-parity planes (K = 3*cin) --------
    xb = x_nhwc.astype(jnp.bfloat16)
    xp = jnp.pad(xb, ((0, 0), (1, 2 * h_out - h), (1, 2 * w_out - w), (0, 0)))

    def build_plane(parity, rows):
        taps = [xp[:, parity::2, dx::2, :][:, :rows, :w_out, :] for dx in range(3)]
        p = jnp.concatenate(taps, axis=-1)                # (n, rows, w_out, 3*cin)
        return p.reshape(n, (rows * w_out) // g, k_in)    # dx-pack + lane grouping

    p0 = build_plane(0, h_out + 1)                        # rows 2r and 2r+2 taps
    p1 = build_plane(1, h_out)                            # rows 2r+1 taps

    # ---- fold BN scale into weights; block-diagonalize for lane grouping --------
    wf = (weight * scale.reshape(1, 1, 1, cout)).reshape(3, 3 * cin, cout)
    if g > 1:
        eye = jnp.eye(g, dtype=wf.dtype)
        wf = jnp.einsum("ij,dkc->dikjc", eye, wf).reshape(3, k_in, cout_g)
    # TODO(synk): on v7x the 128->128 stages could use fp8 MXU operands (~2x) if
    # the accuracy budget allows; bf16 kept for v5e/v6e parity.
    wf = wf.astype(jnp.bfloat16)
    bvec = bias.reshape(cout).astype(jnp.float32)
    if g > 1:
        bvec = jnp.tile(bvec, (g,))
    b2 = bvec.reshape(1, cout_g)

    # ---- M-axis tiling with a one-output-row halo (bounds VMEM per step) --------
    halo = _round_up(wout_g, 8)
    budget = _vmem_budget_bytes()
    if force_tile_rows is not None:
        tile = max(halo, _round_up(force_tile_rows, halo))
    else:
        tile = _choose_tile_rows(m_g, halo, k_in, cout_g, budget)
    if tile <= wout_g:                                    # keep the split non-empty
        tile += halo
    n_tiles = -(-m_g // tile)
    m_pad = n_tiles * tile

    p0 = jnp.pad(p0, ((0, 0), (0, m_pad + halo - p0.shape[1]), (0, 0)))
    p1 = jnp.pad(p1, ((0, 0), (0, m_pad - p1.shape[1]), (0, 0)))

    tpb = tile // halo                                    # halo blocks per tile
    out = pl.pallas_call(
        _make_stage_kernel(tile, wout_g),
        out_shape=jax.ShapeDtypeStruct((n, m_pad, cout_g), jnp.bfloat16),
        grid=(n, n_tiles),
        in_specs=[
            pl.BlockSpec((1, tile, k_in), lambda b, t: (b, t, 0)),       # even plane
            pl.BlockSpec((1, halo, k_in), lambda b, t: (b, (t + 1) * tpb, 0)),  # halo
            pl.BlockSpec((1, tile, k_in), lambda b, t: (b, t, 0)),       # odd plane
            # TODO(synk): pipeline_mode=pl.Buffered(1) for the constant-index weight
            # block would drop its redundant second VMEM buffer when tiles are tight.
            pl.BlockSpec((3, k_in, cout_g), lambda b, t: (0, 0, 0)),     # weights
            pl.BlockSpec((1, cout_g), lambda b, t: (0, 0)),              # bias
        ],
        out_specs=pl.BlockSpec((1, tile, cout_g), lambda b, t: (b, t, 0)),
        scratch_shapes=[pltpu.VMEM((tile, cout_g), jnp.float32)],
        compiler_params=pltpu.CompilerParams(
            dimension_semantics=("parallel", "parallel"),
            vmem_limit_bytes=int(budget)),
    )(p0, p0, p1, wf, b2)

    out = out[:, :m_g, :]                                 # drop padded junk rows
    return out.reshape(n, h_out, w_out, cout)             # free reshapes


def _encoder_forward(x_nchw, params):
    x_nhwc = jnp.transpose(x_nchw, (0, 2, 3, 1))
    feat = x_nhwc
    feats = []
    for (w, scale, bias) in params:
        feat = conv3x3_s2_bn_relu(feat, w, scale, bias)   # bf16 NHWC between stages
        feats.append(feat)
    # TODO(synk): the three tiny 128->128 late stages could be fused into a single
    #   pallas_call holding intermediates in VMEM (saves 2 launches + HBM trips).
    # TODO(synk): returning bf16/NHWC (or emitting NCHW straight from the kernel)
    #   would remove the per-stage XLA transpose + f32 upcast below; kept so the
    #   returned features match the PyTorch module's NCHW / input-dtype contract.
    return [x_nchw] + [
        jnp.transpose(f, (0, 3, 1, 2)).astype(x_nchw.dtype) for f in feats
    ]


class TimmUniversalEncoderPallas:
    """Pallas stand-in for TimmUniversalEncoder (synthetic timm backbone)."""

    # TODO(synk): real timm backbones vary per `name`; a fixed 5-stage channel
    # progression (rounded to MXU/lane-friendly widths) stands in since no
    # checkpoint/architecture can be loaded here.
    _STAGE_CHANNELS = (32, 64, 128, 128, 128)

    def __init__(self, in_channels=3, depth=5, output_stride=32, seed=0):
        self._in_channels = in_channels
        self._depth = depth
        self._output_stride = output_stride
        chans = list(self._STAGE_CHANNELS[:depth])
        self._out_channels = [in_channels] + chans

        key = jax.random.PRNGKey(seed)
        self.params = []
        cin = in_channels
        for cout in chans:
            key, kw, ks, kb = jax.random.split(key, 4)
            fan_in = 3 * 3 * cin
            w = jax.random.normal(kw, (3, 3, cin, cout), jnp.float32)
            w = w * (2.0 / fan_in) ** 0.5
            scale = 1.0 + 0.1 * jax.random.normal(ks, (1, cout), jnp.float32)
            bias = 0.1 * jax.random.normal(kb, (1, cout), jnp.float32)
            self.params.append((w, scale, bias))
            cin = cout
        self._forward = jax.jit(_encoder_forward)

    @property
    def out_channels(self):
        return self._out_channels

    @property
    def output_stride(self):
        return min(self._output_stride, 2 ** self._depth)

    def forward(self, x_nchw):
        return self._forward(x_nchw, self.params)

    __call__ = forward


def _ref_conv_bn_relu(x_nhwc, weight, scale, bias):
    """XLA reference: same bf16 operands, f32 accumulation, bf16 result."""
    xb = x_nhwc.astype(jnp.bfloat16)
    wf = (weight * scale.reshape(1, 1, 1, -1)).astype(jnp.bfloat16)
    r = jax.lax.conv_general_dilated(
        xb, wf, window_strides=(2, 2), padding=((1, 1), (1, 1)),
        dimension_numbers=("NHWC", "HWIO", "NHWC"),
        preferred_element_type=jnp.float32)
    r = jnp.maximum(r + bias.reshape(1, 1, 1, -1), 0.0)
    return r.astype(jnp.bfloat16).astype(jnp.float32)


if __name__ == "__main__":
    key = jax.random.PRNGKey(0)

    def rand_stage(k, cin, cout):
        kw, ks, kb = jax.random.split(k, 3)
        w = jax.random.normal(kw, (3, 3, cin, cout), jnp.float32)
        w = w * (2.0 / (9 * cin)) ** 0.5
        s = 1.0 + 0.1 * jax.random.normal(ks, (1, cout), jnp.float32)
        b = 0.1 * jax.random.normal(kb, (1, cout), jnp.float32)
        return w, s, b

    # ---- direct single-stage checks: exercise multi-tile / halo / grouping ----
    direct_tests = [
        ((1, 24, 24, 16), 128, 32),   # multi-tile, ungrouped, halo split
        ((1, 13, 17, 8), 32, 16),     # odd H/W, narrow cout, grouping disabled
        ((1, 20, 16, 8), 32, 8),      # grouped (g=4) + multi-tile + row padding
    ]
    for idx, (shape, cout, tile) in enumerate(direct_tests):
        key, kx, kp = jax.random.split(key, 3)
        x_t = jax.random.normal(kx, shape, jnp.float32)
        w_t, s_t, b_t = rand_stage(kp, shape[-1], cout)
        got = conv3x3_s2_bn_relu(x_t, w_t, s_t, b_t,
                                 force_tile_rows=tile).astype(jnp.float32)
        got = jax.block_until_ready(got)
        want = _ref_conv_bn_relu(x_t, w_t, s_t, b_t)
        assert got.shape == want.shape, (idx, got.shape, want.shape)
        assert jnp.allclose(got, want, atol=2e-2, rtol=2e-2), idx

    # ---- full encoder forward ----
    n, c, hh, ww = 2, 3, 32, 32          # 32x32 keeps all 5 stride-2 stages >= 1x1
    key, kx = jax.random.split(key)
    x = jax.random.normal(kx, (n, c, hh, ww), jnp.float32)

    enc = TimmUniversalEncoderPallas(in_channels=c, depth=5, output_stride=32)
    feats = jax.block_until_ready(enc(x))

    # Shape contract: [x] + depth features at strides 2, 4, 8, 16, 32.
    expected = [(n, c, hh, ww)]
    s = 1
    for cout in enc.out_channels[1:]:
        s *= 2
        expected.append((n, cout, hh // s, ww // s))
    got_shapes = [tuple(map(int, f.shape)) for f in feats]
    assert got_shapes == expected, (got_shapes, expected)
    assert enc.output_stride == 32

    # Numeric check of every stage against XLA's conv with identical bf16 operands
    # (BN scale folded into weights) and f32 accumulation.
    ref = jnp.transpose(x, (0, 2, 3, 1))
    for i, (w, scale, bias) in enumerate(enc.params):
        r = _ref_conv_bn_relu(ref, w, scale, bias)
        got = jnp.transpose(feats[i + 1], (0, 2, 3, 1)).astype(jnp.float32)
        assert jnp.allclose(got, r, atol=4e-2, rtol=4e-2), i
        ref = r

    print("KERNEL_OK")
</pallas_src>

<mosaic_0001>
module attributes {stable_mosaic.version = 11 : i64} {
  func.func @kernel(%arg0: i32, %arg1: i32, %arg2: memref<1x32x48xbf16, #tpu.memory_space<vmem>>, %arg3: memref<1x16x48xbf16, #tpu.memory_space<vmem>>, %arg4: memref<1x32x48xbf16, #tpu.memory_space<vmem>>, %arg5: memref<3x48x128xbf16, #tpu.memory_space<vmem>>, %arg6: memref<1x128xf32, #tpu.memory_space<vmem>>, %arg7: memref<1x32x128xbf16, #tpu.memory_space<vmem>>, %arg8: memref<32x128xf32, #tpu.memory_space<vmem>>) attributes {dimension_semantics = [#tpu.dimension_semantics<parallel>, #tpu.dimension_semantics<parallel>], iteration_bounds = array<i64: 1, 5>, scalar_prefetch = 0 : i64, scratch_operands = 1 : i64, tpu.core_type = #tpu.core_type<tc>, window_params = [{transform_indices = @transform_0, window_bounds = array<i64: 1, 32, 48>}, {transform_indices = @transform_1, window_bounds = array<i64: 1, 16, 48>}, {transform_indices = @transform_2, window_bounds = array<i64: 1, 32, 48>}, {pipeline_mode = #tpu.pipeline_mode<synchronous>, transform_indices = @transform_3, window_bounds = array<i64: 3, 48, 128>}, {pipeline_mode = #tpu.pipeline_mode<synchronous>, transform_indices = @transform_4, window_bounds = array<i64: 1, 128>}, {transform_indices = @transform_5, window_bounds = array<i64: 1, 32, 128>}]} {
    %c0 = arith.constant 0 : index
    %c0_0 = arith.constant 0 : index
    %c0_1 = arith.constant 0 : index
    %0 = vector.load %arg2[%c0, %c0_0, %c0_1] : memref<1x32x48xbf16, #tpu.memory_space<vmem>>, vector<1x32x48xbf16>
    %1 = vector.shape_cast %0 : vector<1x32x48xbf16> to vector<32x48xbf16>
    %c0_2 = arith.constant 0 : index
    %c0_3 = arith.constant 0 : index
    %c0_4 = arith.constant 0 : index
    %2 = vector.load %arg5[%c0_2, %c0_3, %c0_4] : memref<3x48x128xbf16, #tpu.memory_space<vmem>>, vector<1x48x128xbf16>
    %3 = vector.shape_cast %2 : vector<1x48x128xbf16> to vector<48x128xbf16>
    %cst = arith.constant dense<0.000000e+00> : vector<32x128xf32>
    %4 = tpu.matmul %1, %3, %cst {dimension_numbers = #tpu.dot_dimension_numbers<[1], [0], [0], [1], [0, 0, 1, 1], [], []>} : vector<32x48xbf16>, vector<48x128xbf16>, vector<32x128xf32> -> vector<32x128xf32>
    %c0_5 = arith.constant 0 : index
    %c0_6 = arith.constant 0 : index
    %c0_7 = arith.constant 0 : index
    %5 = vector.load %arg4[%c0_5, %c0_6, %c0_7] : memref<1x32x48xbf16, #tpu.memory_space<vmem>>, vector<1x32x48xbf16>
    %6 = vector.shape_cast %5 : vector<1x32x48xbf16> to vector<32x48xbf16>
    %c1 = arith.constant 1 : index
    %c0_8 = arith.constant 0 : index
    %c0_9 = arith.constant 0 : index
    %7 = vector.load %arg5[%c1, %c0_8, %c0_9] : memref<3x48x128xbf16, #tpu.memory_space<vmem>>, vector<1x48x128xbf16>
    %8 = vector.shape_cast %7 : vector<1x48x128xbf16> to vector<48x128xbf16>
    %cst_10 = arith.constant dense<0.000000e+00> : vector<32x128xf32>
    %9 = tpu.matmul %6, %8, %cst_10 {dimension_numbers = #tpu.dot_dimension_numbers<[1], [0], [0], [1], [0, 0, 1, 1], [], []>} : vector<32x48xbf16>, vector<48x128xbf16>, vector<32x128xf32> -> vector<32x128xf32>
    %10 = arith.addf %4, %9 : vector<32x128xf32>
    %c0_11 = arith.constant 0 : index
    %c0_12 = arith.constant 0 : index
    %11 = vector.load %arg8[%c0_11, %c0_12] : memref<32x128xf32, #tpu.memory_space<vmem>>, vector<32x128xf32>
    tpu.vector_store %arg8[%c0_11, %c0_12], %10 {strides = array<i32>} : memref<32x128xf32, #tpu.memory_space<vmem>>, vector<32x128xf32>,
    %c0_13 = arith.constant 0 : index
    %c0_14 = arith.constant 0 : index
    %12 = vector.load %arg8[%c0_13, %c0_14] : memref<32x128xf32, #tpu.memory_space<vmem>>, vector<20x128xf32>
    %c0_15 = arith.constant 0 : index
    %c12 = arith.constant 12 : index
    %c0_16 = arith.constant 0 : index
    %13 = vector.load %arg2[%c0_15, %c12, %c0_16] : memref<1x32x48xbf16, #tpu.memory_space<vmem>>, vector<1x20x48xbf16>
    %14 = vector.shape_cast %13 : vector<1x20x48xbf16> to vector<20x48xbf16>
    %c2 = arith.constant 2 : index
    %c0_17 = arith.constant 0 : index
    %c0_18 = arith.constant 0 : index
    %15 = vector.load %arg5[%c2, %c0_17, %c0_18] : memref<3x48x128xbf16, #tpu.memory_space<vmem>>, vector<1x48x128xbf16>
    %16 = vector.shape_cast %15 : vector<1x48x128xbf16> to vector<48x128xbf16>
    %cst_19 = arith.constant dense<0.000000e+00> : vector<20x128xf32>
    %17 = tpu.matmul %14, %16, %cst_19 {dimension_numbers = #tpu.dot_dimension_numbers<[1], [0], [0], [1], [0, 0, 1, 1], [], []>} : vector<20x48xbf16>, vector<48x128xbf16>, vector<20x128xf32> -> vector<20x128xf32>
    %18 = arith.addf %12, %17 : vector<20x128xf32>
    %c0_20 = arith.constant 0 : index
    %c0_21 = arith.constant 0 : index
    %19 = vector.load %arg8[%c0_20, %c0_21] : memref<32x128xf32, #tpu.memory_space<vmem>>, vector<20x128xf32>
    tpu.vector_store %arg8[%c0_20, %c0_21], %18 {strides = array<i32>} : memref<32x128xf32, #tpu.memory_space<vmem>>, vector<20x128xf32>,
    %c20 = arith.constant 20 : index
    %c0_22 = arith.constant 0 : index
    %20 = vector.load %arg8[%c20, %c0_22] : memref<32x128xf32, #tpu.memory_space<vmem>>, vector<12x128xf32>
    %c0_23 = arith.constant 0 : index
    %c0_24 = arith.constant 0 : index
    %c0_25 = arith.constant 0 : index
    %21 = vector.load %arg3[%c0_23, %c0_24, %c0_25] : memref<1x16x48xbf16, #tpu.memory_space<vmem>>, vector<1x12x48xbf16>
    %22 = vector.shape_cast %21 : vector<1x12x48xbf16> to vector<12x48xbf16>
    %c2_26 = arith.constant 2 : index
    %c0_27 = arith.constant 0 : index
    %c0_28 = arith.constant 0 : index
    %23 = vector.load %arg5[%c2_26, %c0_27, %c0_28] : memref<3x48x128xbf16, #tpu.memory_space<vmem>>, vector<1x48x128xbf16>
    %24 = vector.shape_cast %23 : vector<1x48x128xbf16> to vector<48x128xbf16>
    %cst_29 = arith.constant dense<0.000000e+00> : vector<12x128xf32>
    %25 = tpu.matmul %22, %24, %cst_29 {dimension_numbers = #tpu.dot_dimension_numbers<[1], [0], [0], [1], [0, 0, 1, 1], [], []>} : vector<12x48xbf16>, vector<48x128xbf16>, vector<12x128xf32> -> vector<12x128xf32>
    %26 = arith.addf %20, %25 : vector<12x128xf32>
    %c20_30 = arith.constant 20 : index
    %c0_31 = arith.constant 0 : index
    %27 = vector.load %arg8[%c20_30, %c0_31] : memref<32x128xf32, #tpu.memory_space<vmem>>, vector<12x128xf32>
    tpu.vector_store %arg8[%c20_30, %c0_31], %26 {strides = array<i32>} : memref<32x128xf32, #tpu.memory_space<vmem>>, vector<12x128xf32>,
    %c0_32 = arith.constant 0 : index
    %c0_33 = arith.constant 0 : index
    %28 = vector.load %arg8[%c0_32, %c0_33] : memref<32x128xf32, #tpu.memory_space<vmem>>, vector<32x128xf32>
    %c0_34 = arith.constant 0 : index
    %c0_35 = arith.constant 0 : index
    %29 = vector.load %arg6[%c0_34, %c0_35] : memref<1x128xf32, #tpu.memory_space<vmem>>, vector<1x128xf32>
    %30 = vector.broadcast %29 : vector<1x128xf32> to vector<32x128xf32>
    %31 = arith.addf %28, %30 : vector<32x128xf32>
    %cst_36 = arith.constant 0.000000e+00 : f32
    %32 = vector.broadcast %cst_36 : f32 to vector<32x128xf32>
    %33 = arith.maximumf %31, %32 : vector<32x128xf32>
    %34 = arith.truncf %33 : vector<32x128xf32> to vector<32x128xbf16>
    %c0_37 = arith.constant 0 : index
    %c0_38 = arith.constant 0 : index
    %c0_39 = arith.constant 0 : index
    %35 = vector.load %arg7[%c0_37, %c0_38, %c0_39] : memref<1x32x128xbf16, #tpu.memory_space<vmem>>, vector<1x32x128xbf16>
    %36 = vector.shape_cast %35 : vector<1x32x128xbf16> to vector<32x128xbf16>
    %37 = vector.shape_cast %34 : vector<32x128xbf16> to vector<1x32x128xbf16>
    tpu.vector_store %arg7[%c0_37, %c0_38, %c0_39], %37 {strides = array<i32>} : memref<1x32x128xbf16, #tpu.memory_space<vmem>>, vector<1x32x128xbf16>,
    return
  }
  func.func @transform_0(%arg0: i32, %arg1: i32) -> (i32, i32, i32) {
    %c0_i32 = arith.constant 0 : i32
    %c0_i32_0 = arith.constant 0 : i32
    return %arg0, %arg1, %c0_i32 : i32, i32, i32
  }
  func.func @transform_1(%arg0: i32, %arg1: i32) -> (i32, i32, i32) {
    %c1_i32 = arith.constant 1 : i32
    %0 = arith.addi %arg1, %c1_i32 : i32
    %c2_i32 = arith.constant 2 : i32
    %1 = arith.muli %0, %c2_i32 : i32
    %c0_i32 = arith.constant 0 : i32
    %c0_i32_0 = arith.constant 0 : i32
    return %arg0, %1, %c0_i32 : i32, i32, i32
  }
  func.func @transform_2(%arg0: i32, %arg1: i32) -> (i32, i32, i32) {
    %c0_i32 = arith.constant 0 : i32
    %c0_i32_0 = arith.constant 0 : i32
    return %arg0, %arg1, %c0_i32 : i32, i32, i32
  }
  func.func @transform_3(%arg0: i32, %arg1: i32) -> (i32, i32, i32) {
    %c0_i32 = arith.constant 0 : i32
    %c0_i32_0 = arith.constant 0 : i32
    %c0_i32_1 = arith.constant 0 : i32
    %c0_i32_2 = arith.constant 0 : i32
    return %c0_i32, %c0_i32_0, %c0_i32_1 : i32, i32, i32
  }
  func.func @transform_4(%arg0: i32, %arg1: i32) -> (i32, i32) {
    %c0_i32 = arith.constant 0 : i32
    %c0_i32_0 = arith.constant 0 : i32
    %c0_i32_1 = arith.constant 0 : i32
    return %c0_i32, %c0_i32_0 : i32, i32
  }
  func.func @transform_5(%arg0: i32, %arg1: i32) -> (i32, i32, i32) {
    %c0_i32 = arith.constant 0 : i32
    %c0_i32_0 = arith.constant 0 : i32
    return %arg0, %arg1, %c0_i32 : i32, i32, i32
  }
}

</mosaic_0001>

<llo_original>
// kernel: tpu_custom_call.1
$region0: #{tpu_custom_call.1}
  #allocation0 [shape = 'u32[]', space=smem, size = 0x4, offset = 0x4, fixed_abs, tag = 'smem constant byte address 0x4 - core index']
  #allocation1 [shape = 'u32[144,128]{1,0:T(1,128)}', space=vmem, size = 0x12000, scoped, tag = 'internal scratch']
  #allocation2 [shape = 'f32[32,128]{1,0:T(8,128)}', space=vmem, size = 0x4000, scoped, tag = 'scratch operand']
  %s0 = inlined_call_operand.vmem [shape: bf16[1,176,48], index: 0, kind: input, shape index: {}]
  %s1 = inlined_call_operand.vmem [shape: bf16[1,176,48], index: 1, kind: input, shape index: {}]
  %s2 = inlined_call_operand.vmem [shape: bf16[1,160,48], index: 2, kind: input, shape index: {}]
  %s3 = inlined_call_operand.vmem [shape: bf16[3,48,128], index: 3, kind: input, shape index: {}]
  %s4 = inlined_call_operand.vmem [shape: f32[1,128], index: 4, kind: input, shape index: {}]
  %s5 = inlined_call_operand.hbm [shape: bf16[1,160,128], index: 5, kind: output, shape index: {}]
  %s6 = sld [smem:[#allocation0]]
  $region53: #{tpu_custom_call.1} parent=0
    _
  %s8 = ssub.s32 1, %s6
  %s9 = scalar_select 0, %s8, %s6
  $region1: #{tpu_custom_call.1} parent=0
    #allocation3 [shape = 'u8[16384]{0}', space=vmem, size = 0x4000, scoped, tag = 'output window, operand 0']
    #allocation4 [shape = 's32[2]{0}', space=sflag, size = 0x8, scoped, tag = 'scoped memory for tpu_custom_call.1']
    %10 = vsyncpa [#allocation4], 0
    %s11 = scalar_lea.sflag [#allocation4], 1
    %12 = vsyncpa %s11, 0
    loop: start=0, step=1, limit=7
    $region2: #{tpu_custom_call.1} parent=1 // loop_pre_header
      _
    $region3: #{tpu_custom_call.1} parent=1 // loop_header
      %s14 = sphi 0, %s18
      %p15 = scmp.ge.s32.totalorder %s14, 7
      %s21 = sphi 0, %s33
      %s22 = sphi 0, %s29
      %s23 = sphi 0, %s21
      %s24 = sphi 0, %s22
      %s25 = sphi 0, %s23
      %s26 = sphi 0, %s24
      %s38 = sphi 0, %s40
      %s41 = sphi 0, %s38
      %s42 = sphi 0, %s41
      %s58 = sphi 0, %s42
      %s70 = sphi 0, %s72
      %s73 = sphi 0, %s70
      %s74 = sphi 0, %s73
      %s90 = sphi 0, %s74
      %s98 = sphi 0, %s100
      %s101 = sphi 0, %s98
      %s102 = sphi 0, %s101
      %s118 = sphi 0, %s102
      %s122 = sphi 0, %s122
      %s124 = sphi 0, %s122
      %s125 = sphi 0, %s124
      %s139 = sphi 0, %s125
      %s143 = sphi 0, %s143
      %s145 = sphi 0, %s143
      %s146 = sphi 0, %s145
      %s160 = sphi 0, %s146
      %s168 = sphi 0, %s170
      %s171 = sphi 0, %s168
      %s172 = sphi 0, %s171
      %s188 = sphi 0, %s172
    $region4: #{tpu_custom_call.1} parent=1 // loop_header_branch
      %17 = sbr.rel (%p15) target = $region8
    $region5: #{tpu_custom_call.1} parent=1 // loop_body
      %s19 = ssub.s32 %s14, 1
      %s20 = ssub.s32 %s14, 2
      %s27 = sadd.s32 1, %s22
      %p28 = scmp.ge.s32.totalorder %s27, 5
      %s29 = scalar_select %p28, 0, %s27
      %s30 = sadd.s32 1, %s21
      %s31 = scalar_select %p28, %s30, %s21
      %p32 = scmp.ge.s32.totalorder %s31, 1
      %s33 = scalar_select %p32, 0, %s31
      %s34 = ssub.s32 %s21, %s33
      %s35 = ssub.s32 %s22, %s29
      %s36 = sor.u32 %s34, %s35
      %p37 = scmp.eq.s32.totalorder %s36, 0
      %s39 = sadd.s32 %s38, 1
      %s40 = scalar_select %p37, %s38, %s39
      %p43 = pneg %p37
      %p44 = scmp.eq.s32.totalorder %s14, 4
      %p45 = por %p43, %p44
      %p46 = scmp.ne.s32.totalorder %s38, %s41
      %p47 = scmp.eq.s32.totalorder %s14, 0
      %p48 = por %p46, %p47
      %p49 = scmp.ne.s32.totalorder %s38, %s41
      %p50 = scmp.eq.s32.totalorder %s19, 4
      %p51 = por %p49, %p50
      %p52 = scmp.ne.s32.totalorder %s41, %s42
      %p53 = scmp.eq.s32.totalorder %s19, 0
      %p54 = por %p52, %p53
      %p55 = scmp.ne.s32.totalorder %s41, %s42
      %p56 = scmp.eq.s32.totalorder %s20, 4
      %p57 = por %p55, %p56
      %p59 = scmp.ne.s32.totalorder %s42, %s58
      %p60 = scmp.eq.s32.totalorder %s20, 0
      %p61 = por %p59, %p60
      %s62 = sadd.s32 %s22, 1
      %s63 = smul.u32 %s62, 2
      %s64 = sadd.s32 %s29, 1
      %s65 = smul.u32 %s64, 2
      %s66 = ssub.s32 %s21, %s33
      %s67 = ssub.s32 %s63, %s65
      %s68 = sor.u32 %s66, %s67
      %p69 = scmp.eq.s32.totalorder %s68, 0
      %s71 = sadd.s32 %s70, 1
      %s72 = scalar_select %p69, %s70, %s71
      %p75 = pneg %p69
      %p76 = scmp.eq.s32.totalorder %s14, 4
      %p77 = por %p75, %p76
      %p78 = scmp.ne.s32.totalorder %s70, %s73
      %p79 = scmp.eq.s32.totalorder %s14, 0
      %p80 = por %p78, %p79
      %p81 = scmp.ne.s32.totalorder %s70, %s73
      %p82 = scmp.eq.s32.totalorder %s19, 4
      %p83 = por %p81, %p82
      %p84 = scmp.ne.s32.totalorder %s73, %s74
      %p85 = scmp.eq.s32.totalorder %s19, 0
      %p86 = por %p84, %p85
      %p87 = scmp.ne.s32.totalorder %s73, %s74
      %p88 = scmp.eq.s32.totalorder %s20, 4
      %p89 = por %p87, %p88
      %p91 = scmp.ne.s32.totalorder %s74, %s90
      %p92 = scmp.eq.s32.totalorder %s20, 0
      %p93 = por %p91, %p92
      %s94 = ssub.s32 %s21, %s33
      %s95 = ssub.s32 %s22, %s29
      %s96 = sor.u32 %s94, %s95
      %p97 = scmp.eq.s32.totalorder %s96, 0
      %s99 = sadd.s32 %s98, 1
      %s100 = scalar_select %p97, %s98, %s99
      %p103 = pneg %p97
      %p104 = scmp.eq.s32.totalorder %s14, 4
      %p105 = por %p103, %p104
      %p106 = scmp.ne.s32.totalorder %s98, %s101
      %p107 = scmp.eq.s32.totalorder %s14, 0
      %p108 = por %p106, %p107
      %p109 = scmp.ne.s32.totalorder %s98, %s101
      %p110 = scmp.eq.s32.totalorder %s19, 4
      %p111 = por %p109, %p110
      %p112 = scmp.ne.s32.totalorder %s101, %s102
      %p113 = scmp.eq.s32.totalorder %s19, 0
      %p114 = por %p112, %p113
      %p115 = scmp.ne.s32.totalorder %s101, %s102
      %p116 = scmp.eq.s32.totalorder %s20, 4
      %p117 = por %p115, %p116
      %p119 = scmp.ne.s32.totalorder %s102, %s118
      %p120 = scmp.eq.s32.totalorder %s20, 0
      %p121 = por %p119, %p120
      %s123 = sadd.s32 %s122, 1
      %p126 = scmp.eq.s32.totalorder %s14, 4
      %p127 = scmp.ne.s32.totalorder %s122, %s124
      %p128 = scmp.eq.s32.totalorder %s14, 0
      %p129 = por %p127, %p128
      %p130 = scmp.ne.s32.totalorder %s122, %s124
      %p131 = scmp.eq.s32.totalorder %s19, 4
      %p132 = por %p130, %p131
      %p133 = scmp.ne.s32.totalorder %s124, %s125
      %p134 = scmp.eq.s32.totalorder %s19, 0
      %p135 = por %p133, %p134
      %p136 = scmp.ne.s32.totalorder %s124, %s125
      %p137 = scmp.eq.s32.totalorder %s20, 4
      %p138 = por %p136, %p137
      %p140 = scmp.ne.s32.totalorder %s125, %s139
      %p141 = scmp.eq.s32.totalorder %s20, 0
      %p142 = por %p140, %p141
      %s144 = sadd.s32 %s143, 1
      %p147 = scmp.eq.s32.totalorder %s14, 4
      %p148 = scmp.ne.s32.totalorder %s143, %s145
      %p149 = scmp.eq.s32.totalorder %s14, 0
      %p150 = por %p148, %p149
      %p151 = scmp.ne.s32.totalorder %s143, %s145
      %p152 = scmp.eq.s32.totalorder %s19, 4
      %p153 = por %p151, %p152
      %p154 = scmp.ne.s32.totalorder %s145, %s146
      %p155 = scmp.eq.s32.totalorder %s19, 0
      %p156 = por %p154, %p155
      %p157 = scmp.ne.s32.totalorder %s145, %s146
      %p158 = scmp.eq.s32.totalorder %s20, 4
      %p159 = por %p157, %p158
      %p161 = scmp.ne.s32.totalorder %s146, %s160
      %p162 = scmp.eq.s32.totalorder %s20, 0
      %p163 = por %p161, %p162
      %s164 = ssub.s32 %s21, %s33
      %s165 = ssub.s32 %s22, %s29
      %s166 = sor.u32 %s164, %s165
      %p167 = scmp.eq.s32.totalorder %s166, 0
      %s169 = sadd.s32 %s168, 1
      %s170 = scalar_select %p167, %s168, %s169
      %p173 = pneg %p167
      %p174 = scmp.eq.s32.totalorder %s14, 4
      %p175 = por %p173, %p174
      %p176 = scmp.ne.s32.totalorder %s168, %s171
      %p177 = scmp.eq.s32.totalorder %s14, 0
      %p178 = por %p176, %p177
      %p179 = scmp.ne.s32.totalorder %s168, %s171
      %p180 = scmp.eq.s32.totalorder %s19, 4
      %p181 = por %p179, %p180
      %p182 = scmp.ne.s32.totalorder %s171, %s172
      %p183 = scmp.eq.s32.totalorder %s19, 0
      %p184 = por %p182, %p183
      %p185 = scmp.ne.s32.totalorder %s171, %s172
      %p186 = scmp.eq.s32.totalorder %s20, 4
      %p187 = por %p185, %p186
      %p189 = scmp.ne.s32.totalorder %s172, %s188
      %p190 = scmp.eq.s32.totalorder %s20, 0
      %p191 = por %p189, %p190
      %p192 = scmp.le.s32.totalorder 1, %s14
      %p193 = scmp.lt.s32.totalorder %s14, 6
      %p194 = pnand %p192, %p193
      %p195 = pneg %p194
      // Predicated region
      $region9: #{tpu_custom_call.1} parent=5 // pred_check
        _
      $region10: #{tpu_custom_call.1} parent=5 // pred_check_branch
        %197 = sbr.rel (%p194) target = $region12
      $region11: #{tpu_custom_call.1} parent=5 // pred_region
        %s198 = ssub.s32 %s14, 1
        // Predicated region
        $region13: #{tpu_custom_call.1} parent=11 // pred_check
          %p199 = pneg %p135
        $region14: #{tpu_custom_call.1} parent=11 // pred_check_branch
          %201 = sbr.rel (%p199) target = $region16
        $region15: #{tpu_custom_call.1} parent=11 // pred_region
          _
        $region16: #{tpu_custom_call.1} parent=11 // pred_fallthru
          _
        // Predicated region
        $region17: #{tpu_custom_call.1} parent=11 // pred_check
          %p202 = pneg %p156
        $region18: #{tpu_custom_call.1} parent=11 // pred_check_branch
          %204 = sbr.rel (%p202) target = $region20
        $region19: #{tpu_custom_call.1} parent=11 // pred_region
          _
        $region20: #{tpu_custom_call.1} parent=11 // pred_fallthru
          _
      $region12: #{tpu_custom_call.1} parent=5 // pred_fallthru
        _
      %p205 = scmp.lt.s32.totalorder %s14, 5
      // Predicated region
      $region21: #{tpu_custom_call.1} parent=5 // pred_check
        %p206 = pneg %p205
      $region22: #{tpu_custom_call.1} parent=5 // pred_check_branch
        %208 = sbr.rel (%p206) target = $region24
      $region23: #{tpu_custom_call.1} parent=5 // pred_region
        // Predicated region
        $region25: #{tpu_custom_call.1} parent=23 // pred_check
          %p209 = pneg %p48
        $region26: #{tpu_custom_call.1} parent=23 // pred_check_branch
          %211 = sbr.rel (%p209) target = $region28
        $region27: #{tpu_custom_call.1} parent=23 // pred_region
          %s212 = smul.u32 4, %s22
          %s213 = ssub.s32 22, %s212
          %p214 = scmp.lt.s32.totalorder %s213, 4
          %s215 = scalar_select %p214, %s213, 4
          %s216 = smul.u32 64, %s215
          %p217 = scmp.lt.s32.totalorder %s21, 0
          %s218 = scalar_select %p217, %s21, 0
          %p219 = scmp.lt.s32.totalorder %s212, 21
          %s220 = scalar_select %p219, %s212, 21
          %s221 = smul.addr %s218, 22
          %s222 = sadd.s32 %s220, %s221
          %s223 = smul.addr %s222, 4
          %s224 = scalar_lea.vmem %s0, %s223
          %s225 = smul.u32 4, %s22
          %s226 = ssub.s32 22, %s225
          %p227 = scmp.lt.s32.totalorder %s226, 4
          %s228 = scalar_select %p227, %s226, 4
          %s229 = smul.u32 64, %s228
        $region28: #{tpu_custom_call.1} parent=23 // pred_fallthru
          _
        // Predicated region
        $region29: #{tpu_custom_call.1} parent=23 // pred_check
          %p230 = pneg %p80
        $region30: #{tpu_custom_call.1} parent=23 // pred_check_branch
          %232 = sbr.rel (%p230) target = $region32
        $region31: #{tpu_custom_call.1} parent=23 // pred_region
          %s233 = sadd.s32 %s22, 1
          %s234 = smul.u32 %s233, 2
          %s235 = smul.u32 2, %s234
          %p236 = scmp.lt.s32.totalorder %s21, 0
          %s237 = scalar_select %p236, %s21, 0
          %p238 = scmp.lt.s32.totalorder %s235, 21
          %s239 = scalar_select %p238, %s235, 21
          %s240 = smul.addr %s237, 22
          %s241 = sadd.s32 %s239, %s240
          %s242 = smul.addr %s241, 4
          %s243 = scalar_lea.vmem %s1, %s242
          %s244 = sadd.s32 %s22, 1
          %s245 = smul.u32 %s244, 2
          %s246 = smul.u32 2, %s245
        $region32: #{tpu_custom_call.1} parent=23 // pred_fallthru
          _
        // Predicated region
        $region33: #{tpu_custom_call.1} parent=23 // pred_check
          %p247 = pneg %p108
        $region34: #{tpu_custom_call.1} parent=23 // pred_check_branch
          %249 = sbr.rel (%p247) target = $region36
        $region35: #{tpu_custom_call.1} parent=23 // pred_region
          %s250 = smul.u32 4, %s22
          %p251 = scmp.lt.s32.totalorder %s21, 0
          %s252 = scalar_select %p251, %s21, 0
          %p253 = scmp.lt.s32.totalorder %s250, 19
          %s254 = scalar_select %p253, %s250, 19
          %s255 = smul.addr %s252, 20
          %s256 = sadd.s32 %s254, %s255
          %s257 = smul.addr %s256, 4
          %s258 = scalar_lea.vmem %s2, %s257
          %s259 = smul.u32 4, %s22
        $region36: #{tpu_custom_call.1} parent=23 // pred_fallthru
          _
      $region24: #{tpu_custom_call.1} parent=5 // pred_fallthru
        _
      %p260 = scmp.le.s32.totalorder 1, %s14
      %p261 = scmp.lt.s32.totalorder %s14, 6
      %p262 = pnand %p260, %p261
      %p263 = pneg %p262
      // Predicated region
      $region37: #{tpu_custom_call.1} parent=5 // pred_check
        _
      $region38: #{tpu_custom_call.1} parent=5 // pred_check_branch
        %265 = sbr.rel (%p262) target = $region40
      $region39: #{tpu_custom_call.1} parent=5 // pred_region
        %s266 = ssub.s32 %s14, 1
        %s267 = smul.u32 4, %s24
        %s268 = ssub.s32 22, %s267
        %p269 = scmp.lt.s32.totalorder %s268, 4
        %s270 = scalar_select %p269, %s268, 4
        %s271 = smul.u32 64, %s270
        %p272 = scmp.lt.s32.totalorder %s23, 0
        %s273 = scalar_select %p272, %s23, 0
        %p274 = scmp.lt.s32.totalorder %s267, 21
        %s275 = scalar_select %p274, %s267, 21
        %s276 = smul.addr %s273, 22
        %s277 = sadd.s32 %s275, %s276
        %s278 = smul.addr %s277, 4
        %s279 = scalar_lea.vmem %s0, %s278
        %p280 = pneg %p54
        %p281 = pneg %p51
        %s282 = sadd.s32 %s24, 1
        %s283 = smul.u32 %s282, 2
        %s284 = smul.u32 2, %s283
        %p285 = scmp.lt.s32.totalorder %s23, 0
        %s286 = scalar_select %p285, %s23, 0
        %p287 = scmp.lt.s32.totalorder %s284, 21
        %s288 = scalar_select %p287, %s284, 21
        %s289 = smul.addr %s286, 22
        %s290 = sadd.s32 %s288, %s289
        %s291 = smul.addr %s290, 4
        %s292 = scalar_lea.vmem %s1, %s291
        %p293 = pneg %p86
        %p294 = pneg %p83
        %s295 = smul.u32 4, %s24
        %p296 = scmp.lt.s32.totalorder %s23, 0
        %s297 = scalar_select %p296, %s23, 0
        %p298 = scmp.lt.s32.totalorder %s295, 19
        %s299 = scalar_select %p298, %s295, 19
        %s300 = smul.addr %s297, 20
        %s301 = sadd.s32 %s299, %s300
        %s302 = smul.addr %s301, 4
        %s303 = scalar_lea.vmem %s2, %s302
        %p304 = pneg %p114
        %p305 = pneg %p111
        %p306 = pneg %p135
        %p307 = pneg %p132
        %p308 = pneg %p156
        %p309 = pneg %p153
        %p310 = pneg %p184
        %p311 = pneg %p181
        %s312 = sand.u32 %s171, 1
        %s313 = scalar_lea.sflag [#allocation4], %s312
        %s314 = sand.u32 %s171, 1
        %s315 = smul.addr %s314, 16
        %s316 = scalar_lea.vmem [#allocation3], %s315
        %s317 = smul.u32 4, %s24
        %s318 = ssub.s32 22, %s317
        %p319 = scmp.lt.s32.totalorder %s318, 4
        %s320 = scalar_select %p319, %s318, 4
        %s321 = smul.u32 64, %s320
        %p322 = scmp.lt.s32.totalorder %s23, 0
        %s323 = scalar_select %p322, %s23, 0
        %p324 = scmp.lt.s32.totalorder %s317, 21
        %s325 = scalar_select %p324, %s317, 21
        %s326 = smul.addr %s323, 22
        %s327 = sadd.s32 %s325, %s326
        %s328 = smul.addr %s327, 4
        %s329 = scalar_lea.vmem %s0, %s328
        %s330 = smul.u32 4, %s24
        %s331 = ssub.s32 22, %s330
        %p332 = scmp.lt.s32.totalorder %s331, 4
        %s333 = scalar_select %p332, %s331, 4
        %s334 = smul.u32 64, %s333
        %s335 = sadd.s32 %s24, 1
        %s336 = smul.u32 %s335, 2
        %s337 = smul.u32 2, %s336
        %p338 = scmp.lt.s32.totalorder %s23, 0
        %s339 = scalar_select %p338, %s23, 0
        %p340 = scmp.lt.s32.totalorder %s337, 21
        %s341 = scalar_select %p340, %s337, 21
        %s342 = smul.addr %s339, 22
        %s343 = sadd.s32 %s341, %s342
        %s344 = smul.addr %s343, 4
        %s345 = scalar_lea.vmem %s1, %s344
        %s346 = sadd.s32 %s24, 1
        %s347 = smul.u32 %s346, 2
        %s348 = smul.u32 2, %s347
        %s349 = smul.u32 4, %s24
        %p350 = scmp.lt.s32.totalorder %s23, 0
        %s351 = scalar_select %p350, %s23, 0
        %p352 = scmp.lt.s32.totalorder %s349, 19
        %s353 = scalar_select %p352, %s349, 19
        %s354 = smul.addr %s351, 20
        %s355 = sadd.s32 %s353, %s354
        %s356 = smul.addr %s355, 4
        %s357 = scalar_lea.vmem %s2, %s356
        %s358 = smul.u32 4, %s24
        %s359 = smul.u32 4, %s24
        %v361 = vld [vmem:[%s329] sm:$0xf]
        %v362 = vld [vmem:[%s329 + $0x4] sm:$0xf]
        %v363 = vld [vmem:[%s329 + $0x8] sm:$0xf]
        %v364 = vld [vmem:[%s329 + $0xc] sm:$0xf]
        %v365 = vld [vmem:[%s3] sm:$0xf]
        %v366 = vld [vmem:[%s3 + $0x4] sm:$0xf]
        %v367 = vld [vmem:[%s3 + $0x8] sm:$0xf]
        %v368 = vld [vmem:[%s3 + $0xc] sm:$0xf]
        %v369 = vld [vmem:[%s3 + $0x10] sm:$0xf]
        %v370 = vld [vmem:[%s3 + $0x14] sm:$0xf]
        %v371 = vld [vmem:[%s357] sm:$0xf]
        %v372 = vld [vmem:[%s357 + $0x4] sm:$0xf]
        %v373 = vld [vmem:[%s357 + $0x8] sm:$0xf]
        %v374 = vld [vmem:[%s357 + $0xc] sm:$0xf]
        %s375 = scalar_lea.vmem %s3, 24
        %v376 = vld [vmem:[%s375] sm:$0xf]
        %v377 = vld [vmem:[%s375 + $0x4] sm:$0xf]
        %v378 = vld [vmem:[%s375 + $0x8] sm:$0xf]
        %v379 = vld [vmem:[%s375 + $0xc] sm:$0xf]
        %v380 = vld [vmem:[%s375 + $0x10] sm:$0xf]
        %v381 = vld [vmem:[%s375 + $0x14] sm:$0xf]
        %v386 = vunpack.c.l.b16 %v371
        %v387 = vunpack.c.l.b16 %v372
        %v388 = vunpack.c.l.b16 %v373
        %v389 = vunpack.c.l.b16 %v374
        %v390 = vpack.c.b16 %v387, %v386
        %v391 = vpack.c.b16 %v389, %v388
        %v398 = vunpack.c.l.b16 %v376
        %v399 = vunpack.c.l.b16 %v377
        %v400 = vunpack.c.l.b16 %v378
        %v401 = vunpack.c.l.b16 %v379
        %v402 = vunpack.c.l.b16 %v380
        %v403 = vunpack.c.l.b16 %v381
        %v404 = vpack.c.b16 %v399, %v398
        %v405 = vpack.c.b16 %v401, %v400
        %v406 = vpack.c.b16 %v403, %v402
        %vm410 = vcmask 392192
        %v412 = vsel %vm410, %v390, 0
        %v415 = vsel %vm410, %v391, 0
        %417 = vmatprep.subr.bf16.mxu0 0
        %418 = vmatpush1.bf16.msra.mxu0 %v404
        %419 = vmatprep.subr.bf16.mxu0 0
        %420 = vmatpush1.bf16.msra.mxu0 %v405
        %421 = vmatprep.subr.bf16.mxu0 0
        %422 = vmatpush1.bf16.msra.mxu0 %v406
        %423 = vmatprep.subr.bf16.mxu0 0
        %424 = vmatpush1.bf16.msra.mxu0 0
        %425 = vmatprep.subr.bf16.mxu0 0
        %426 = vmatpush1.bf16.msra.mxu0 0
        %427 = vmatprep.subr.bf16.mxu0 0
        %428 = vmatpush1.bf16.msra.mxu0 0
        %429 = vmatprep.subr.bf16.mxu0 0
        %430 = vmatpush1.bf16.msra.mxu0 0
        %431 = vmatprep.subr.bf16.mxu0 0
        %432 = vmatpush1.bf16.msra.mxu0 0
        %433 = vmatprep.subr.bf16.mxu0 0
        %434 = vmatpush1.bf16.msra.mxu0 0
        %435 = vmatprep.subr.bf16.mxu0 0
        %436 = vmatpush1.bf16.msra.mxu0 0
        %437 = vmatprep.subr.bf16.mxu0 0
        %438 = vmatpush1.bf16.msra.mxu0 0
        %439 = vmatprep.subr.bf16.mxu0 0
        %440 = vmatpush1.bf16.msra.mxu0 0
        %441 = vmatprep.subr.bf16.mxu0 0
        %442 = vmatpush1.bf16.msra.mxu0 0
        %443 = vmatprep.subr.bf16.mxu0 0
        %444 = vmatpush1.bf16.msra.mxu0 0
        %445 = vmatprep.subr.bf16.mxu0 0
        %446 = vmatpush1.bf16.msra.mxu0 0
        %447 = vmatprep.subr.bf16.mxu0 0
        %448 = vmatpush1.bf16.msra.mxu0 0
        %449 = vmatprep.mubr.bf16.mxu0 0
        %450 = vmatmul.mubr.bf16.gmra.mrb[0].mxu0 %v412
        %v451 = vpop.f32.mrb[0].mxu0
        %v452 = vadd.f32 0.0, %v451
        %v453 = vpop.f32.mrb[0].mxu0
        %v454 = vpop.f32.mrb[0].mxu0
        %v455 = vadd.f32 0.0, %v454
        %v456 = vpop.f32.mrb[0].mxu0
        %457 = vmatprep.mubr.bf16.mxu0 0
        %458 = vmatmul.mubr.bf16.gmra.mrb[0].mxu0 %v415
        %v459 = vpop.f32.mrb[0].mxu0
        %v460 = vadd.f32 0.0, %v459
        %v461 = vpop.f32.mrb[0].mxu0
        %v462 = vpop.f32.mrb[0].mxu0
        %v463 = vadd.f32 0.0, %v462
        %v464 = vpop.f32.mrb[0].mxu0
        %465 = vdwg.mxu0
        %v470 = vunpack.c.l.b16 %v361
        %v471 = vunpack.c.l.b16 %v362
        %v472 = vunpack.c.l.b16 %v363
        %v473 = vunpack.c.l.b16 %v364
        %v474 = vpack.c.b16 %v471, %v470
        %v475 = vpack.c.b16 %v473, %v472
        %v482 = vunpack.c.l.b16 %v365
        %v483 = vunpack.c.l.b16 %v366
        %v484 = vunpack.c.l.b16 %v367
        %v485 = vunpack.c.l.b16 %v368
        %v486 = vunpack.c.l.b16 %v369
        %v487 = vunpack.c.l.b16 %v370
        %v488 = vpack.c.b16 %v483, %v482
        %v489 = vpack.c.b16 %v485, %v484
        %v490 = vpack.c.b16 %v487, %v486
        %v495 = vsel %vm410, %v474, 0
        %v498 = vsel %vm410, %v475, 0
        %500 = vmatprep.subr.bf16.mxu0 0
        %501 = vmatpush1.bf16.msra.mxu0 %v488
        %502 = vmatprep.subr.bf16.mxu0 0
        %503 = vmatpush1.bf16.msra.mxu0 %v489
        %504 = vmatprep.subr.bf16.mxu0 0
        %505 = vmatpush1.bf16.msra.mxu0 %v490
        %506 = vmatprep.subr.bf16.mxu0 0
        %507 = vmatpush1.bf16.msra.mxu0 0
        %508 = vmatprep.subr.bf16.mxu0 0
        %509 = vmatpush1.bf16.msra.mxu0 0
        %510 = vmatprep.subr.bf16.mxu0 0
        %511 = vmatpush1.bf16.msra.mxu0 0
        %512 = vmatprep.subr.bf16.mxu0 0
        %513 = vmatpush1.bf16.msra.mxu0 0
        %514 = vmatprep.subr.bf16.mxu0 0
        %515 = vmatpush1.bf16.msra.mxu0 0
        %516 = vmatprep.subr.bf16.mxu0 0
        %517 = vmatpush1.bf16.msra.mxu0 0
        %518 = vmatprep.subr.bf16.mxu0 0
        %519 = vmatpush1.bf16.msra.mxu0 0
        %520 = vmatprep.subr.bf16.mxu0 0
        %521 = vmatpush1.bf16.msra.mxu0 0
        %522 = vmatprep.subr.bf16.mxu0 0
        %523 = vmatpush1.bf16.msra.mxu0 0
        %524 = vmatprep.subr.bf16.mxu0 0
        %525 = vmatpush1.bf16.msra.mxu0 0
        %526 = vmatprep.subr.bf16.mxu0 0
        %527 = vmatpush1.bf16.msra.mxu0 0
        %528 = vmatprep.subr.bf16.mxu0 0
        %529 = vmatpush1.bf16.msra.mxu0 0
        %530 = vmatprep.subr.bf16.mxu0 0
        %531 = vmatpush1.bf16.msra.mxu0 0
        %532 = vmatprep.mubr.bf16.mxu0 0
        %533 = vmatmul.mubr.bf16.gmra.mrb[0].mxu0 %v495
        %v534 = vpop.f32.mrb[0].mxu0
        %v535 = vadd.f32 %v452, %v534
        %v536 = vpop.f32.mrb[0].mxu0
        %v537 = vpop.f32.mrb[0].mxu0
        %v538 = vadd.f32 %v455, %v537
        %v539 = vpop.f32.mrb[0].mxu0
        %540 = vmatprep.mubr.bf16.mxu0 0
        %541 = vmatmul.mubr.bf16.gmra.mrb[0].mxu0 %v498
        %v542 = vpop.f32.mrb[0].mxu0
        %v543 = vadd.f32 %v460, %v542
        %v544 = vpop.f32.mrb[0].mxu0
        %v545 = vpop.f32.mrb[0].mxu0
        %v546 = vadd.f32 %v463, %v545
        %v547 = vpop.f32.mrb[0].mxu0
        %548 = vdwg.mxu0
        %549 = vst [vmem:[#allocation2] sm:$0xff] %v535
        %550 = vst [vmem:[#allocation2 + $0x8] sm:$0xff] %v538
        %551 = vst [vmem:[#allocation2 + $0x10] sm:$0xff] %v543
        %552 = vst [vmem:[#allocation2 + $0x18] sm:$0xff] %v546
        %v553 = vld [vmem:[#allocation2] sm:$0xff]
        %v554 = vld [vmem:[#allocation2 + $0x8] sm:$0xff]
        %v555 = vld [vmem:[#allocation2 + $0x10] sm:$0xf]
        %v556 = vld [vmem:[%s329 + $0x4] sm:$0xc]
        %v557 = vld [vmem:[%s329 + $0x8] sm:$0xf]
        %v558 = vld [vmem:[%s329 + $0xc] sm:$0xf]
        %s559 = scalar_lea.vmem %s3, 48
        %v560 = vld [vmem:[%s559] sm:$0xf]
        %v561 = vld [vmem:[%s559 + $0x4] sm:$0xf]
        %v562 = vld [vmem:[%s559 + $0x8] sm:$0xf]
        %v563 = vld [vmem:[%s559 + $0xc] sm:$0xf]
        %v564 = vld [vmem:[%s559 + $0x10] sm:$0xf]
        %v565 = vld [vmem:[%s559 + $0x14] sm:$0xf]
        %v569 = vunpack.c.l.b16 %v556
        %v570 = vunpack.c.l.b16 %v557
        %v571 = vunpack.c.l.b16 %v558
        %v572 = vpack.c.b16 %v570, %v569
        %v573 = vpack.c.b16 %v571, %v571
        %vm574 = vcmask 1045504
        %v575 = vrot.slane %v572, 2
        %v576 = vrot.slane %v573, 2
        %v577 = vsel %vm574, %v575, %v576
        %v584 = vunpack.c.l.b16 %v560
        %v585 = vunpack.c.l.b16 %v561
        %v586 = vunpack.c.l.b16 %v562
        %v587 = vunpack.c.l.b16 %v563
        %v588 = vunpack.c.l.b16 %v564
        %v589 = vunpack.c.l.b16 %v565
        %v590 = vpack.c.b16 %v585, %v584
        %v591 = vpack.c.b16 %v587, %v586
        %v592 = vpack.c.b16 %v589, %v588
        %v597 = vsel %vm410, %v577, 0
        %v600 = vsel %vm410, %v576, 0
        %602 = vmatprep.subr.bf16.mxu0 0
        %603 = vmatpush1.bf16.msra.mxu0 %v590
        %604 = vmatprep.subr.bf16.mxu0 0
        %605 = vmatpush1.bf16.msra.mxu0 %v591
        %606 = vmatprep.subr.bf16.mxu0 0
        %607 = vmatpush1.bf16.msra.mxu0 %v592
        %608 = vmatprep.subr.bf16.mxu0 0
        %609 = vmatpush1.bf16.msra.mxu0 0
        %610 = vmatprep.subr.bf16.mxu0 0
        %611 = vmatpush1.bf16.msra.mxu0 0
        %612 = vmatprep.subr.bf16.mxu0 0
        %613 = vmatpush1.bf16.msra.mxu0 0
        %614 = vmatprep.subr.bf16.mxu0 0
        %615 = vmatpush1.bf16.msra.mxu0 0
        %616 = vmatprep.subr.bf16.mxu0 0
        %617 = vmatpush1.bf16.msra.mxu0 0
        %618 = vmatprep.subr.bf16.mxu0 0
        %619 = vmatpush1.bf16.msra.mxu0 0
        %620 = vmatprep.subr.bf16.mxu0 0
        %621 = vmatpush1.bf16.msra.mxu0 0
        %622 = vmatprep.subr.bf16.mxu0 0
        %623 = vmatpush1.bf16.msra.mxu0 0
        %624 = vmatprep.subr.bf16.mxu0 0
        %625 = vmatpush1.bf16.msra.mxu0 0
        %626 = vmatprep.subr.bf16.mxu0 0
        %627 = vmatpush1.bf16.msra.mxu0 0
        %628 = vmatprep.subr.bf16.mxu0 0
        %629 = vmatpush1.bf16.msra.mxu0 0
        %630 = vmatprep.subr.bf16.mxu0 0
        %631 = vmatpush1.bf16.msra.mxu0 0
        %632 = vmatprep.subr.bf16.mxu0 0
        %633 = vmatpush1.bf16.msra.mxu0 0
        %634 = vmatprep.mubr.bf16.mxu0 0
        %635 = vmatmul.mubr.bf16.gmra.mrb[0].mxu0 %v597
        %v636 = vpop.f32.mrb[0].mxu0
        %v637 = vadd.f32 0.0, %v636
        %v638 = vpop.f32.mrb[0].mxu0
        %v639 = vpop.f32.mrb[0].mxu0
        %v640 = vadd.f32 0.0, %v639
        %v641 = vpop.f32.mrb[0].mxu0
        %642 = vmatprep.mubr.bf16.mxu0 0
        %643 = vmatmul.mubr.bf16.gmra.mrb[0].mxu0 %v600
        %v644 = vpop.f32.mrb[0].mxu0
        %v645 = vadd.f32 0.0, %v644
        %v646 = vpop.f32.mrb[0].mxu0
        %v647 = vpop.f32.mrb[0].mxu0
        %v648 = vpop.f32.mrb[0].mxu0
        %649 = vdwg.mxu0
        %v650 = vadd.f32 %v553, %v637
        %v651 = vadd.f32 %v554, %v640
        %v652 = vadd.f32 %v555, %v645
        %653 = vst [vmem:[#allocation2] sm:$0xff] %v650
        %654 = vst [vmem:[#allocation2 + $0x8] sm:$0xff] %v651
        %655 = vst [vmem:[#allocation2 + $0x10] sm:$0xf] %v652
        %v656 = vld [vmem:[#allocation2 + $0x14] sm:$0xff]
        %v657 = vld [vmem:[#allocation2 + $0x1c] sm:$0xf]
        %v658 = vld [vmem:[%s345] sm:$0xf]
        %v659 = vld [vmem:[%s345 + $0x4] sm:$0x3]
        %v660 = vld [vmem:[%s559] sm:$0xf]
        %v661 = vld [vmem:[%s559 + $0x4] sm:$0xf]
        %v662 = vld [vmem:[%s559 + $0x8] sm:$0xf]
        %v663 = vld [vmem:[%s559 + $0xc] sm:$0xf]
        %v664 = vld [vmem:[%s559 + $0x10] sm:$0xf]
        %v665 = vld [vmem:[%s559 + $0x14] sm:$0xf]
        %v668 = vunpack.c.l.b16 %v658
        %v669 = vunpack.c.l.b16 %v659
        %v670 = vpack.c.b16 %v669, %v668
        %v677 = vunpack.c.l.b16 %v660
        %v678 = vunpack.c.l.b16 %v661
        %v679 = vunpack.c.l.b16 %v662
        %v680 = vunpack.c.l.b16 %v663
        %v681 = vunpack.c.l.b16 %v664
        %v682 = vunpack.c.l.b16 %v665
        %v683 = vpack.c.b16 %v678, %v677
        %v684 = vpack.c.b16 %v680, %v679
        %v685 = vpack.c.b16 %v682, %v681
        %v690 = vsel %vm410, %v670, 0
        %692 = vmatprep.subr.bf16.mxu0 0
        %693 = vmatpush1.bf16.msra.mxu0 %v683
        %694 = vmatprep.subr.bf16.mxu0 0
        %695 = vmatpush1.bf16.msra.mxu0 %v684
        %696 = vmatprep.subr.bf16.mxu0 0
        %697 = vmatpush1.bf16.msra.mxu0 %v685
        %698 = vmatprep.subr.bf16.mxu0 0
        %699 = vmatpush1.bf16.msra.mxu0 0
        %700 = vmatprep.subr.bf16.mxu0 0
        %701 = vmatpush1.bf16.msra.mxu0 0
        %702 = vmatprep.subr.bf16.mxu0 0
        %703 = vmatpush1.bf16.msra.mxu0 0
        %704 = vmatprep.subr.bf16.mxu0 0
        %705 = vmatpush1.bf16.msra.mxu0 0
        %706 = vmatprep.subr.bf16.mxu0 0
        %707 = vmatpush1.bf16.msra.mxu0 0
        %708 = vmatprep.subr.bf16.mxu0 0
        %709 = vmatpush1.bf16.msra.mxu0 0
        %710 = vmatprep.subr.bf16.mxu0 0
        %711 = vmatpush1.bf16.msra.mxu0 0
        %712 = vmatprep.subr.bf16.mxu0 0
        %713 = vmatpush1.bf16.msra.mxu0 0
        %714 = vmatprep.subr.bf16.mxu0 0
        %715 = vmatpush1.bf16.msra.mxu0 0
        %716 = vmatprep.subr.bf16.mxu0 0
        %717 = vmatpush1.bf16.msra.mxu0 0
        %718 = vmatprep.subr.bf16.mxu0 0
        %719 = vmatpush1.bf16.msra.mxu0 0
        %720 = vmatprep.subr.bf16.mxu0 0
        %721 = vmatpush1.bf16.msra.mxu0 0
        %722 = vmatprep.subr.bf16.mxu0 0
        %723 = vmatpush1.bf16.msra.mxu0 0
        %724 = vmatprep.mubr.bf16.mxu0 0
        %725 = vmatmul.mubr.bf16.gmra.mrb[0].mxu0 %v690
        %v726 = vpop.f32.mrb[0].mxu0
        %v727 = vadd.f32 0.0, %v726
        %v728 = vpop.f32.mrb[0].mxu0
        %v729 = vpop.f32.mrb[0].mxu0
        %v730 = vadd.f32 0.0, %v729
        %v731 = vpop.f32.mrb[0].mxu0
        %732 = vdwg.mxu0
        %v733 = vadd.f32 %v656, %v727
        %v734 = vadd.f32 %v657, %v730
        %735 = vst [vmem:[#allocation2 + $0x14] sm:$0xff] %v733
        %736 = vst [vmem:[#allocation2 + $0x1c] sm:$0xf] %v734
        %v737 = vld [vmem:[#allocation2] sm:$0xff]
        %v738 = vld [vmem:[#allocation2 + $0x8] sm:$0xff]
        %v739 = vld [vmem:[#allocation2 + $0x10] sm:$0xff]
        %v740 = vld [vmem:[#allocation2 + $0x18] sm:$0xff]
        %v741 = vld [vmem:[%s4] sm:$0x1]
        %v743 = vlaneseq
        %v744 = vshrl.u32 %v743, 7
        %v745 = vsub.s32 0, %v744
        %v746 = vrot.slane %v741, %v745
        %v748 = vadd.f32 %v737, %v746
        %v749 = vadd.f32 %v738, %v746
        %v750 = vadd.f32 %v739, %v746
        %v751 = vadd.f32 %v740, %v746
        %v752 = vmax.f32 %v748, 0.0
        %v753 = vmax.f32 %v749, 0.0
        %v754 = vmax.f32 %v750, 0.0
        %v755 = vmax.f32 %v751, 0.0
        %v756 = vpack.c.bf16 %v753, %v752
        %v757 = vpack.c.bf16 %v755, %v754
        %v760 = vunpack.c.l.b16 %v756
        %v761 = vunpack.c.h.b16 %v756
        %v762 = vunpack.c.l.b16 %v757
        %v763 = vunpack.c.h.b16 %v757
        %v764 = vpack.c.b16 %v760, %v760
        %v765 = vpack.c.b16 %v761, %v761
        %v766 = vpack.c.b16 %v762, %v762
        %v767 = vpack.c.b16 %v763, %v763
        %772 = vst [vmem:[%s316] sm:$0xf] %v764
        %773 = vst [vmem:[%s316 + $0x4] sm:$0xf] %v765
        %774 = vst [vmem:[%s316 + $0x8] sm:$0xf] %v766
        %775 = vst [vmem:[%s316 + $0xc] sm:$0xf] %v767
        %s776 = sand.u32 %s171, 1
        %s777 = scalar_lea.sflag [#allocation4], %s776
        %s778 = sand.u32 %s171, 1
        %s779 = smul.addr %s778, 16
        %s780 = scalar_lea.vmem [#allocation3], %s779
        // Predicated region
        $region41: #{tpu_custom_call.1} parent=39 // pred_check
          %p781 = pneg %p181
        $region42: #{tpu_custom_call.1} parent=39 // pred_check_branch
          %783 = sbr.rel (%p781) target = $region44
        $region43: #{tpu_custom_call.1} parent=39 // pred_region
          %s784 = smul.u32 4, %s24
          %s786 = ssub.s32 256, 256
          %787 = vsyncadd %s777, %s786
          %s788 = smul.addr %s23, 20
          %s789 = sadd.s32 %s784, %s788
          %s790 = smul.addr %s789, 64
          %s791 = scalar_lea.hbm %s5, %s790
          %s792 = sshll.u32 %s780, 4
          %s793 = int_to_ptr.vmem [resolvable:$true] %s792
          %798 = dma.vmem_to_hbm [thread:$0]  %s793, 256, %s791, %s777, 64, 64, 4
        $region44: #{tpu_custom_call.1} parent=39 // pred_fallthru
          _
      $region40: #{tpu_custom_call.1} parent=5 // pred_fallthru
        _
      %p799 = scmp.le.s32.totalorder 2, %s14
      // Predicated region
      $region45: #{tpu_custom_call.1} parent=5 // pred_check
        %p800 = pneg %p799
      $region46: #{tpu_custom_call.1} parent=5 // pred_check_branch
        %802 = sbr.rel (%p800) target = $region48
      $region47: #{tpu_custom_call.1} parent=5 // pred_region
        %s803 = ssub.s32 %s14, 2
        // Predicated region
        $region49: #{tpu_custom_call.1} parent=47 // pred_check
          %p804 = pneg %p187
        $region50: #{tpu_custom_call.1} parent=47 // pred_check_branch
          %806 = sbr.rel (%p804) target = $region52
        $region51: #{tpu_custom_call.1} parent=47 // pred_region
          %s807 = sand.u32 %s172, 1
          %s808 = scalar_lea.sflag [#allocation4], %s807
          %s809 = sand.u32 %s172, 1
          %s810 = smul.addr %s809, 16
          %s811 = scalar_lea.vmem [#allocation3], %s810
          %812 = dma.done %s808, 256
        $region52: #{tpu_custom_call.1} parent=47 // pred_fallthru
          _
      $region48: #{tpu_custom_call.1} parent=5 // pred_fallthru
        _
    $region6: #{tpu_custom_call.1} parent=1 // loop_footer
      %s18 = sadd.s32 1, %s14
    $region7: #{tpu_custom_call.1} parent=1 // loop_footer_branch
      %13 = sbr.rel target = $region3
    $region8: #{tpu_custom_call.1} parent=1 // loop_exit
      _
    %813 = vsyncpa [#allocation4], 1
    %s814 = scalar_lea.sflag [#allocation4], 1
    %815 = vsyncpa %s814, 1

</llo_original>
